<compile_context>
chip_gen: v7x
topology: tpu7x:2x2x1
jax: 0.10.0
libtpu: 0.0.40
codegen_flags: <defaults>
</compile_context>

<pallas_src>
import functools

import jax
import jax.numpy as jnp
from jax.experimental import pallas as pl
from jax.experimental.pallas import tpu as pltpu


def _round_up(x, m):
    return (x + m - 1) // m * m


def _triplet_loss_kernel(a_ref, p_ref, n_ref, o_ref, acc_ref, *,
                         margin, eps, inv_b, tb, steps, b_orig, mask_rows):
    c = pl.program_id(0)          # core / parallel axis
    i = pl.program_id(1)          # reduction axis (arbitrary)

    @pl.when(i == 0)
    def _init():
        acc_ref[...] = jnp.zeros_like(acc_ref)

    # torch.nn.functional.pairwise_distance(x1, x2, p=2, eps) == ||x1 - x2 + eps||_2 per row.
    # Positive branch first so its temporaries are dead before the negative branch loads.
    a = a_ref[...].astype(jnp.float32)
    p = p_ref[...].astype(jnp.float32)
    pos_diff = a - p + eps
    pos_dist = jnp.sqrt(jnp.sum(pos_diff * pos_diff, axis=-1, keepdims=True))   # (TB, 1)

    n = n_ref[...].astype(jnp.float32)
    neg_diff = a - n + eps
    neg_dist = jnp.sqrt(jnp.sum(neg_diff * neg_diff, axis=-1, keepdims=True))   # (TB, 1)

    hinge = jnp.maximum(pos_dist - neg_dist + margin, 0.0)                       # relu, (TB, 1)

    if mask_rows:
        # Zero out contributions from batch-padding rows (only emitted when padding exists).
        row = (c * steps + i) * tb + jax.lax.broadcasted_iota(jnp.int32, hinge.shape, 0)
        hinge = jnp.where(row < b_orig, hinge, 0.0)

    acc_ref[...] += jnp.sum(hinge, keepdims=True)     # (1, 1) partial, VMEM-resident across i

    @pl.when(i == pl.num_programs(1) - 1)
    def _finalize():
        # Multiply by precomputed 1/B instead of an in-kernel divide; broadcast-fill the
        # (8, 128)-aligned per-core output block (wrapper reads element [0, 0] of each block).
        o_ref[...] = jnp.broadcast_to(acc_ref[...] * inv_b, o_ref.shape)


def triplet_loss(anchor, positive, negative, margin=1.0, eps=1e-6, max_block_rows=1024):
    """Pallas TPU implementation of TripletLoss.forward. Returns a scalar f32."""
    assert anchor.shape == positive.shape == negative.shape
    assert anchor.ndim == 2
    B, D = anchor.shape

    # Batch tile: as large as a conservative double-buffer budget allows.
    # Budget: 3 inputs x 2 pipeline buffers x TB x D x itemsize <= ~24 MiB
    # (fits inside v7x's 64 MiB physical VMEM and v5e/v6e's 128 MiB).
    itemsize = jnp.dtype(anchor.dtype).itemsize
    vmem_input_budget = 24 * 1024 * 1024
    max_tb = max(8, (vmem_input_budget // (3 * 2 * D * itemsize)) // 8 * 8)
    TB = int(min(max_block_rows, max_tb, _round_up(B, 8)))

    # Core-parallel split: only if there are >= 2 tiles of work.
    num_tiles = pl.cdiv(B, TB)
    NC = 2 if num_tiles >= 2 else 1

    # Pad batch up to a multiple of NC*TB; padded rows are masked out inside the kernel.
    Bp = _round_up(B, NC * TB)
    if Bp != B:
        pad = [(0, Bp - B), (0, 0)]
        anchor = jnp.pad(anchor, pad)
        positive = jnp.pad(positive, pad)
        negative = jnp.pad(negative, pad)

    steps = Bp // (NC * TB)
    grid = (NC, steps)

    kernel = functools.partial(
        _triplet_loss_kernel,
        margin=float(margin),
        eps=float(eps),
        inv_b=1.0 / B,
        tb=TB,
        steps=steps,
        b_orig=B,
        mask_rows=(Bp != B),
    )

    in_spec = pl.BlockSpec((TB, D), lambda c, i, s=steps: (c * s + i, 0))

    out = pl.pallas_call(
        kernel,
        out_shape=jax.ShapeDtypeStruct((NC * 8, 128), jnp.float32),
        grid_spec=pltpu.PrefetchScalarGridSpec(
            num_scalar_prefetch=0,
            grid=grid,
            in_specs=[in_spec, in_spec, in_spec],
            # Per-core output block; same block index across the reduction axis so it stays
            # VMEM-resident until the last step of that core's slice.
            out_specs=pl.BlockSpec((8, 128), lambda c, i: (c, 0)),
            scratch_shapes=[pltpu.VMEM((1, 1), jnp.float32)],
        ),
        compiler_params=pltpu.CompilerParams(
            dimension_semantics=("parallel", "arbitrary"),
            vmem_limit_bytes=48 * 1024 * 1024,
        ),
    )(anchor, positive, negative)

    # Each core's partial (already scaled by 1/B) sits at row c*8, col 0.
    return jnp.sum(out[::8, 0])


def _reference_triplet_loss(anchor, positive, negative, margin=1.0, eps=1e-6):
    pd = jnp.sqrt(jnp.sum((anchor - positive + eps) ** 2, axis=-1))
    nd = jnp.sqrt(jnp.sum((anchor - negative + eps) ** 2, axis=-1))
    return jnp.mean(jnp.maximum(pd - nd + margin, 0.0))


if __name__ == "__main__":
    key = jax.random.PRNGKey(0)

    # Case 1: small, aligned shapes (single grid step, single core slice).
    k_a, k_p, k_n = jax.random.split(key, 3)
    B, D = 8, 128
    anchor = jax.random.normal(k_a, (B, D), dtype=jnp.float32)
    positive = jax.random.normal(k_p, (B, D), dtype=jnp.float32)
    negative = jax.random.normal(k_n, (B, D), dtype=jnp.float32)

    loss = jax.block_until_ready(triplet_loss(anchor, positive, negative, margin=1.0))
    ref = jax.block_until_ready(_reference_triplet_loss(anchor, positive, negative, margin=1.0))
    assert jnp.allclose(loss, ref, rtol=1e-4, atol=1e-5), (loss, ref)

    # Case 2: non-multiple-of-8 batch and non-128-multiple feature dim (padding + mask path).
    k_a2, k_p2, k_n2 = jax.random.split(jax.random.PRNGKey(0), 3)
    B2, D2 = 37, 96
    anchor2 = jax.random.normal(k_a2, (B2, D2), dtype=jnp.float32)
    positive2 = jax.random.normal(k_p2, (B2, D2), dtype=jnp.float32)
    negative2 = jax.random.normal(k_n2, (B2, D2), dtype=jnp.float32)

    loss2 = jax.block_until_ready(triplet_loss(anchor2, positive2, negative2, margin=1.0))
    ref2 = jax.block_until_ready(_reference_triplet_loss(anchor2, positive2, negative2, margin=1.0))
    assert jnp.allclose(loss2, ref2, rtol=1e-4, atol=1e-5), (loss2, ref2)

    # Case 3: multi-tile batch with a small forced tile -> exercises the 2-wide parallel core
    # axis, multi-step reduction, and masking combined.
    k_a3, k_p3, k_n3 = jax.random.split(jax.random.PRNGKey(1), 3)
    B3, D3 = 300, 128
    anchor3 = jax.random.normal(k_a3, (B3, D3), dtype=jnp.float32)
    positive3 = jax.random.normal(k_p3, (B3, D3), dtype=jnp.float32)
    negative3 = jax.random.normal(k_n3, (B3, D3), dtype=jnp.float32)

    loss3 = jax.block_until_ready(
        triplet_loss(anchor3, positive3, negative3, margin=1.0, max_block_rows=64))
    ref3 = jax.block_until_ready(_reference_triplet_loss(anchor3, positive3, negative3, margin=1.0))
    assert jnp.allclose(loss3, ref3, rtol=1e-4, atol=1e-5), (loss3, ref3)

    print("KERNEL_OK")
</pallas_src>

<mosaic_0001>
module attributes {stable_mosaic.version = 11 : i64} {
  func.func @_triplet_loss_kernel(%arg0: i32, %arg1: i32, %arg2: memref<8x128xf32, #tpu.memory_space<vmem>>, %arg3: memref<8x128xf32, #tpu.memory_space<vmem>>, %arg4: memref<8x128xf32, #tpu.memory_space<vmem>>, %arg5: memref<8x128xf32, #tpu.memory_space<vmem>>, %arg6: memref<1x1xf32, #tpu.memory_space<vmem>>) attributes {dimension_semantics = [#tpu.dimension_semantics<parallel>, #tpu.dimension_semantics<arbitrary>], iteration_bounds = array<i64: 1, 1>, scalar_prefetch = 0 : i64, scratch_operands = 1 : i64, tpu.core_type = #tpu.core_type<tc>, window_params = [{transform_indices = @transform_0, window_bounds = array<i64: 8, 128>}, {transform_indices = @transform_1, window_bounds = array<i64: 8, 128>}, {transform_indices = @transform_2, window_bounds = array<i64: 8, 128>}, {transform_indices = @transform_3, window_bounds = array<i64: 8, 128>}]} {
    %c0_i32 = arith.constant 0 : i32
    %0 = arith.cmpi eq, %arg1, %c0_i32 : i32
    %1 = arith.extui %0 : i1 to i32
    %c0_i32_0 = arith.constant 0 : i32
    %2 = arith.cmpi ne, %1, %c0_i32_0 : i32
    scf.if %2 {
      %cst_18 = arith.constant 0.000000e+00 : f32
      %36 = vector.broadcast %cst_18 : f32 to vector<1x1xf32>
      %c0_19 = arith.constant 0 : index
      %c0_20 = arith.constant 0 : index
      %37 = vector.load %arg6[%c0_19, %c0_20] : memref<1x1xf32, #tpu.memory_space<vmem>>, vector<1x1xf32>
      tpu.vector_store %arg6[%c0_19, %c0_20], %36 {strides = array<i32>} : memref<1x1xf32, #tpu.memory_space<vmem>>, vector<1x1xf32>,
    } else {
    }
    %c0 = arith.constant 0 : index
    %c0_1 = arith.constant 0 : index
    %3 = vector.load %arg2[%c0, %c0_1] : memref<8x128xf32, #tpu.memory_space<vmem>>, vector<8x128xf32>
    %c0_2 = arith.constant 0 : index
    %c0_3 = arith.constant 0 : index
    %4 = vector.load %arg3[%c0_2, %c0_3] : memref<8x128xf32, #tpu.memory_space<vmem>>, vector<8x128xf32>
    %5 = arith.subf %3, %4 : vector<8x128xf32>
    %cst = arith.constant 9.99999997E-7 : f32
    %6 = vector.broadcast %cst : f32 to vector<8x128xf32>
    %7 = arith.addf %5, %6 : vector<8x128xf32>
    %8 = arith.mulf %7, %7 : vector<8x128xf32>
    %cst_4 = arith.constant dense<0.000000e+00> : vector<8xf32>
    %9 = vector.multi_reduction <add>, %8, %cst_4 [1] : vector<8x128xf32> to vector<8xf32>
    %10 = vector.shape_cast %9 : vector<8xf32> to vector<8x1xf32>
    %11 = math.sqrt %10 : vector<8x1xf32>
    %c0_5 = arith.constant 0 : index
    %c0_6 = arith.constant 0 : index
    %12 = vector.load %arg4[%c0_5, %c0_6] : memref<8x128xf32, #tpu.memory_space<vmem>>, vector<8x128xf32>
    %13 = arith.subf %3, %12 : vector<8x128xf32>
    %cst_7 = arith.constant 9.99999997E-7 : f32
    %14 = vector.broadcast %cst_7 : f32 to vector<8x128xf32>
    %15 = arith.addf %13, %14 : vector<8x128xf32>
    %16 = arith.mulf %15, %15 : vector<8x128xf32>
    %cst_8 = arith.constant dense<0.000000e+00> : vector<8xf32>
    %17 = vector.multi_reduction <add>, %16, %cst_8 [1] : vector<8x128xf32> to vector<8xf32>
    %18 = vector.shape_cast %17 : vector<8xf32> to vector<8x1xf32>
    %19 = math.sqrt %18 : vector<8x1xf32>
    %20 = arith.subf %11, %19 : vector<8x1xf32>
    %cst_9 = arith.constant 1.000000e+00 : f32
    %21 = vector.broadcast %cst_9 : f32 to vector<8x1xf32>
    %22 = arith.addf %20, %21 : vector<8x1xf32>
    %cst_10 = arith.constant 0.000000e+00 : f32
    %23 = vector.broadcast %cst_10 : f32 to vector<8x1xf32>
    %24 = arith.maximumf %22, %23 : vector<8x1xf32>
    %c0_11 = arith.constant 0 : index
    %c0_12 = arith.constant 0 : index
    %25 = vector.load %arg6[%c0_11, %c0_12] : memref<1x1xf32, #tpu.memory_space<vmem>>, vector<1x1xf32>
    %26 = vector.shape_cast %24 : vector<8x1xf32> to vector<1x8x1xf32>
    %cst_13 = arith.constant dense<0.000000e+00> : vector<1xf32>
    %27 = vector.multi_reduction <add>, %26, %cst_13 [1, 2] : vector<1x8x1xf32> to vector<1xf32>
    %28 = vector.shape_cast %27 : vector<1xf32> to vector<1x1x1xf32>
    %29 = vector.extract %28[0, 0, 0] : f32 from vector<1x1x1xf32>
    %30 = vector.broadcast %29 : f32 to vector<1x1xf32>
    %31 = arith.addf %25, %30 : vector<1x1xf32>
    %c0_14 = arith.constant 0 : index
    %c0_15 = arith.constant 0 : index
    %32 = vector.load %arg6[%c0_14, %c0_15] : memref<1x1xf32, #tpu.memory_space<vmem>>, vector<1x1xf32>
    tpu.vector_store %arg6[%c0_14, %c0_15], %31 {strides = array<i32>} : memref<1x1xf32, #tpu.memory_space<vmem>>, vector<1x1xf32>,
    %c0_i32_16 = arith.constant 0 : i32
    %33 = arith.cmpi eq, %arg1, %c0_i32_16 : i32
    %34 = arith.extui %33 : i1 to i32
    %c0_i32_17 = arith.constant 0 : i32
    %35 = arith.cmpi ne, %34, %c0_i32_17 : i32
    scf.if %35 {
      %c0_18 = arith.constant 0 : index
      %c0_19 = arith.constant 0 : index
      %36 = vector.load %arg6[%c0_18, %c0_19] : memref<1x1xf32, #tpu.memory_space<vmem>>, vector<1x1xf32>
      %cst_20 = arith.constant 1.250000e-01 : f32
      %37 = vector.broadcast %cst_20 : f32 to vector<1x1xf32>
      %38 = arith.mulf %36, %37 : vector<1x1xf32>
      %39 = vector.shape_cast %38 : vector<1x1xf32> to vector<1x1xf32>
      %40 = vector.broadcast %39 : vector<1x1xf32> to vector<8x128xf32>
      %c0_21 = arith.constant 0 : index
      %c0_22 = arith.constant 0 : index
      %41 = vector.load %arg5[%c0_21, %c0_22] : memref<8x128xf32, #tpu.memory_space<vmem>>, vector<8x128xf32>
      tpu.vector_store %arg5[%c0_21, %c0_22], %40 {strides = array<i32>} : memref<8x128xf32, #tpu.memory_space<vmem>>, vector<8x128xf32>,
    } else {
    }
    return
  }
  func.func @transform_0(%arg0: i32, %arg1: i32) -> (i32, i32) {
    %c1_i32 = arith.constant 1 : i32
    %0 = arith.muli %arg0, %c1_i32 : i32
    %1 = arith.addi %0, %arg1 : i32
    %c0_i32 = arith.constant 0 : i32
    %c0_i32_0 = arith.constant 0 : i32
    return %1, %c0_i32 : i32, i32
  }
  func.func @transform_1(%arg0: i32, %arg1: i32) -> (i32, i32) {
    %c1_i32 = arith.constant 1 : i32
    %0 = arith.muli %arg0, %c1_i32 : i32
    %1 = arith.addi %0, %arg1 : i32
    %c0_i32 = arith.constant 0 : i32
    %c0_i32_0 = arith.constant 0 : i32
    return %1, %c0_i32 : i32, i32
  }
  func.func @transform_2(%arg0: i32, %arg1: i32) -> (i32, i32) {
    %c1_i32 = arith.constant 1 : i32
    %0 = arith.muli %arg0, %c1_i32 : i32
    %1 = arith.addi %0, %arg1 : i32
    %c0_i32 = arith.constant 0 : i32
    %c0_i32_0 = arith.constant 0 : i32
    return %1, %c0_i32 : i32, i32
  }
  func.func @transform_3(%arg0: i32, %arg1: i32) -> (i32, i32) {
    %c0_i32 = arith.constant 0 : i32
    %c0_i32_0 = arith.constant 0 : i32
    return %arg0, %c0_i32 : i32, i32
  }
}

</mosaic_0001>

<llo_original>
// kernel: tpu_custom_call.1
$region0: #{tpu_custom_call.1}
  #allocation0 [shape = 'u32[]', space=smem, size = 0x4, offset = 0x4, fixed_abs, tag = 'smem constant byte address 0x4 - core index']
  #allocation1 [shape = 'u32[144,128]{1,0:T(1,128)}', space=vmem, size = 0x12000, scoped, tag = 'internal scratch']
  #allocation2 [shape = 'f32[1,1]{1,0:T(1,128)}', space=vmem, size = 0x200, scoped, tag = 'scratch operand']
  %s0 = inlined_call_operand.hbm [shape: f32[8,128], index: 0, kind: input, shape index: {}]
  %s1 = inlined_call_operand.hbm [shape: f32[8,128], index: 1, kind: input, shape index: {}]
  %s2 = inlined_call_operand.hbm [shape: f32[8,128], index: 2, kind: input, shape index: {}]
  %s3 = inlined_call_operand.hbm [shape: f32[8,128], index: 3, kind: output, shape index: {}]
  %s4 = sld [smem:[#allocation0]]
  $region42: #{tpu_custom_call.1} parent=0
    _
  %s6 = ssub.s32 1, %s4
  %s7 = scalar_select 0, %s6, %s4
  $region1: #{tpu_custom_call.1} parent=0
    #allocation3 [shape = 'u8[4096]{0}', space=vmem, size = 0x1000, scoped, tag = 'input window, operand 0, single buffered']
    #allocation4 [shape = 's32[1]{0}', space=sflag, size = 0x4, scoped, tag = 'scoped memory for tpu_custom_call.1']
    #allocation5 [shape = 's32[1]{0}', space=sflag, size = 0x4, scoped, tag = 'scoped memory for tpu_custom_call.1']
    #allocation6 [shape = 'u8[4096]{0}', space=vmem, size = 0x1000, scoped, tag = 'input window, operand 1, single buffered']
    #allocation7 [shape = 's32[1]{0}', space=sflag, size = 0x4, scoped, tag = 'scoped memory for tpu_custom_call.1']
    #allocation8 [shape = 'u8[4096]{0}', space=vmem, size = 0x1000, scoped, tag = 'input window, operand 2, single buffered']
    #allocation9 [shape = 'u8[4096]{0}', space=vmem, size = 0x1000, scoped, tag = 'output window, operand 0, single buffered']
    %8 = vsyncpa [#allocation4], 0
    %9 = vsyncpa [#allocation7], 0
    %10 = vsyncpa [#allocation5], 0
    // Predicated region
    $region2: #{tpu_custom_call.1} parent=1 // pred_check
      _
    $region3: #{tpu_custom_call.1} parent=1 // pred_check_branch
      %12 = sbr.rel (0) target = $region5
    $region4: #{tpu_custom_call.1} parent=1 // pred_region
      %s13 = sadd.s32 0, 0
      %s15 = ssub.s32 128, 128
      %16 = vsyncadd [#allocation4], %s15
      %s17 = smul.addr %s13, 128
      %s18 = scalar_lea.hbm %s0, %s17
      %s20 = sshll.u32 [#allocation3], 4
      %s21 = int_to_ptr.vmem [resolvable:$true] %s20
      %23 = dma.hbm_to_vmem [thread:$0]  %s18, 128, %s21, [#allocation4]
    $region5: #{tpu_custom_call.1} parent=1 // pred_fallthru
      _
    // Predicated region
    $region6: #{tpu_custom_call.1} parent=1 // pred_check
      _
    $region7: #{tpu_custom_call.1} parent=1 // pred_check_branch
      %25 = sbr.rel (0) target = $region9
    $region8: #{tpu_custom_call.1} parent=1 // pred_region
      %s26 = sadd.s32 0, 0
      %s28 = ssub.s32 128, 128
      %29 = vsyncadd [#allocation7], %s28
      %s30 = smul.addr %s26, 128
      %s31 = scalar_lea.hbm %s1, %s30
      %s33 = sshll.u32 [#allocation6], 4
      %s34 = int_to_ptr.vmem [resolvable:$true] %s33
      %36 = dma.hbm_to_vmem [thread:$0]  %s31, 128, %s34, [#allocation7]
    $region9: #{tpu_custom_call.1} parent=1 // pred_fallthru
      _
    // Predicated region
    $region10: #{tpu_custom_call.1} parent=1 // pred_check
      _
    $region11: #{tpu_custom_call.1} parent=1 // pred_check_branch
      %38 = sbr.rel (0) target = $region13
    $region12: #{tpu_custom_call.1} parent=1 // pred_region
      %s39 = sadd.s32 0, 0
      %s41 = ssub.s32 128, 128
      %42 = vsyncadd [#allocation7], %s41
      %s43 = smul.addr %s39, 128
      %s44 = scalar_lea.hbm %s2, %s43
      %s46 = sshll.u32 [#allocation8], 4
      %s47 = int_to_ptr.vmem [resolvable:$true] %s46
      %49 = dma.hbm_to_vmem [thread:$0]  %s44, 128, %s47, [#allocation7]
    $region13: #{tpu_custom_call.1} parent=1 // pred_fallthru
      _
    // Predicated region
    $region14: #{tpu_custom_call.1} parent=1 // pred_check
      _
    $region15: #{tpu_custom_call.1} parent=1 // pred_check_branch
      %51 = sbr.rel (0) target = $region17
    $region16: #{tpu_custom_call.1} parent=1 // pred_region
      %52 = dma.done [#allocation4], 128
    $region17: #{tpu_custom_call.1} parent=1 // pred_fallthru
      _
    // Predicated region
    $region18: #{tpu_custom_call.1} parent=1 // pred_check
      _
    $region19: #{tpu_custom_call.1} parent=1 // pred_check_branch
      %54 = sbr.rel (0) target = $region21
    $region20: #{tpu_custom_call.1} parent=1 // pred_region
      %55 = dma.done [#allocation7], 128
    $region21: #{tpu_custom_call.1} parent=1 // pred_fallthru
      _
    // Predicated region
    $region22: #{tpu_custom_call.1} parent=1 // pred_check
      _
    $region23: #{tpu_custom_call.1} parent=1 // pred_check_branch
      %57 = sbr.rel (0) target = $region25
    $region24: #{tpu_custom_call.1} parent=1 // pred_region
      %58 = dma.done [#allocation7], 128
    $region25: #{tpu_custom_call.1} parent=1 // pred_fallthru
      _
    %s59 = sadd.s32 0, 0
    %s60 = sadd.s32 0, 0
    %s61 = sadd.s32 0, 0
    %p62 = scmp.eq.s32.totalorder 0, 0
    // Predicated region
    $region26: #{tpu_custom_call.1} parent=1 // pred_check
      %p63 = pneg %p62
    $region27: #{tpu_custom_call.1} parent=1 // pred_check_branch
      %65 = sbr.rel (%p63) target = $region29
    $region28: #{tpu_custom_call.1} parent=1 // pred_region
      %vm66 = vcmask 0
      %67 = vst.msk [vmem:[#allocation2] sm:$0x1] %vm66, 0.0
    $region29: #{tpu_custom_call.1} parent=1 // pred_fallthru
      _
    %v68 = vld [vmem:[#allocation3] sm:$0xff]
    %v69 = vld [vmem:[#allocation6] sm:$0xff]
    %v70 = vsub.f32 %v68, %v69
    %v71 = vadd.f32 %v70, 1e-06
    %v72 = vmul.f32 %v71, %v71
    %73 = vadd.xlane.f32.xlu0 %v72
    %v74 = vpop.xlane.xlu0 %73
    %v75 = vrsqrt.pop %v74
    %v76 = vmul.f32 %v74, %v75
    %vm77 = vcmp.eq.f32.partialorder %v74, inf
    %v78 = vsel %vm77, %v74, %v76
    %vm79 = vcmp.eq.f32.partialorder %v74, 0.0
    %v80 = vand.u32 %v74, 2147483648
    %v81 = vsel %vm79, %v80, %v78
    %v82 = vld [vmem:[#allocation8] sm:$0xff]
    %v83 = vsub.f32 %v68, %v82
    %v84 = vadd.f32 %v83, 1e-06
    %v85 = vmul.f32 %v84, %v84
    %86 = vadd.xlane.f32.xlu0 %v85
    %v87 = vpop.xlane.xlu0 %86
    %v88 = vrsqrt.pop %v87
    %v89 = vmul.f32 %v87, %v88
    %vm90 = vcmp.eq.f32.partialorder %v87, inf
    %v91 = vsel %vm90, %v87, %v89
    %vm92 = vcmp.eq.f32.partialorder %v87, 0.0
    %v93 = vand.u32 %v87, 2147483648
    %v94 = vsel %vm92, %v93, %v91
    %v95 = vsub.f32 %v81, %v94
    %v96 = vadd.f32 %v95, 1.0
    %v97 = vmax.f32 %v96, 0.0
    %v98 = vld [vmem:[#allocation2] sm:$0x1]
    %vm99 = vcmask 7168
    %v100 = vsel %vm99, %v97, 0.0
    %101 = vadd.xlane.f32.xlu0 %v100
    %v102 = vpop.xlane.xlu0 %101
    %v103 = vrot.slane %v102, 4
    %v104 = vadd.f32 %v102, %v103
    %v105 = vrot.slane %v104, 2
    %v106 = vadd.f32 %v104, %v105
    %v107 = vrot.slane %v106, 1
    %v108 = vadd.f32 %v106, %v107
    %s109 = vtos %v108
    %v110 = vstv %s109
    %v111 = vadd.f32 %v98, %v110
    %vm112 = vcmask 0
    %113 = vst.msk [vmem:[#allocation2] sm:$0x1] %vm112, %v111
    // Predicated region
    $region30: #{tpu_custom_call.1} parent=1 // pred_check
      %p114 = pneg %p62
    $region31: #{tpu_custom_call.1} parent=1 // pred_check_branch
      %116 = sbr.rel (%p114) target = $region33
    $region32: #{tpu_custom_call.1} parent=1 // pred_region
      %v117 = vld [vmem:[#allocation2] sm:$0x1]
      %v118 = vmul.f32 %v117, 0.125
      %v120 = vlaneseq
      %v121 = vshrl.u32 %v120, 7
      %v122 = vsub.s32 0, %v121
      %v123 = vrot.slane %v118, %v122
      %124 = vset.pattern.permute.xlu0 0
      %125 = vperm.xlu0 %124, %v123
      %v126 = vpop.permute.xlu0 %125
      %128 = vst [vmem:[#allocation9] sm:$0xff] %v126
    $region33: #{tpu_custom_call.1} parent=1 // pred_fallthru
      _
    // Predicated region
    $region34: #{tpu_custom_call.1} parent=1 // pred_check
      _
    $region35: #{tpu_custom_call.1} parent=1 // pred_check_branch
      %130 = sbr.rel (0) target = $region37
    $region36: #{tpu_custom_call.1} parent=1 // pred_region
      %s132 = ssub.s32 128, 128
      %133 = vsyncadd [#allocation5], %s132
      %s135 = sshll.u32 [#allocation9], 4
      %s136 = int_to_ptr.vmem [resolvable:$true] %s135
      %138 = dma.vmem_to_hbm [thread:$0]  %s136, 128, %s3, [#allocation5]
    $region37: #{tpu_custom_call.1} parent=1 // pred_fallthru
      _
    // Predicated region
    $region38: #{tpu_custom_call.1} parent=1 // pred_check
      _
    $region39: #{tpu_custom_call.1} parent=1 // pred_check_branch
      %140 = sbr.rel (0) target = $region41
    $region40: #{tpu_custom_call.1} parent=1 // pred_region
      %141 = dma.done [#allocation5], 128
    $region41: #{tpu_custom_call.1} parent=1 // pred_fallthru
      _
    %142 = vsyncpa [#allocation4], 1
    %143 = vsyncpa [#allocation7], 1
    %144 = vsyncpa [#allocation5], 1

</llo_original>
